<compile_context>
chip_gen: v7x
topology: tpu7x:2x2x1
jax: 0.10.0
libtpu: 0.0.40
codegen_flags: <defaults>
</compile_context>

<pallas_src>
import functools

import jax
import jax.numpy as jnp
from jax import lax
from jax.experimental import pallas as pl
from jax.experimental.pallas import tpu as pltpu


# ---------------------------------------------------------------------------
# Pallas kernel
# ---------------------------------------------------------------------------
def _basic_block_kernel(x_ref, w1_ref, b1_ref, w2_ref, b2_ref, o_ref, xp_ref,
                        *, B, H, W, C):
    """Fused conv1+bn1+relu + conv2+bn2+residual+relu for B batch elements.

    x_ref : (B, H, W*C)     f32 input slab, W/C interleaved on the lane axis
    w1/w2 : (3*W*C, W*C)    bf16 banded conv weights (kw folded), BN scale folded
    b1/b2 : (1, W*C)        f32 folded-BN bias, tiled over W
    o_ref : (B, H, W*C)     f32 output slab
    xp_ref: (B, H+2, W*C)   bf16 VMEM scratch; rows 0 and H+1 are the zero H-halo
    """
    WC = W * C

    @pl.when(pl.program_id(0) == 0)
    def _init():
        # Zero the scratch once; afterwards only interior rows are ever written,
        # so the two halo rows per image stay zero for the whole grid.
        xp_ref[...] = jnp.zeros_like(xp_ref)

    x_f32 = x_ref[...]                                        # (B, H, WC), residual

    def conv3x3_bn(inp_bf16, w_ref, b_ref):
        # Store interior rows (halo rows stay zero), then take the 3 sublane-
        # shifted kh windows and contract against the kw-banded weight:
        # ONE bf16 MXU matmul with K = 3*W*C, no lane-offset slicing.
        xp_ref[:, pl.ds(1, H), :] = inp_bf16                  # (B, H, WC)
        patch = jnp.concatenate(
            [xp_ref[:, pl.ds(kh, H), :] for kh in range(3)], axis=2
        ).reshape(B * H, 3 * WC)                              # (B*H, 3*WC) bf16
        y = jnp.dot(patch, w_ref[...],
                    preferred_element_type=jnp.float32)       # f32 accumulate
        return y + b_ref[...]                                 # f32 folded-BN bias

    # conv1 + bn1 + relu1   (epilogue in f32)
    h = jnp.maximum(conv3x3_bn(x_f32.astype(jnp.bfloat16), w1_ref, b1_ref), 0.0)
    # conv2 + bn2 + residual + relu   (residual add / ReLU in f32)
    y = conv3x3_bn(h.astype(jnp.bfloat16).reshape(B, H, WC), w2_ref, b2_ref)
    y = jnp.maximum(y + x_f32.reshape(B * H, WC), 0.0)
    o_ref[...] = y.reshape(B, H, WC)


# ---------------------------------------------------------------------------
# Weight / BN preparation (hoisted out of the per-call path)
# ---------------------------------------------------------------------------
def _fold_bn(gamma, beta, mean, var, eps=1e-5):
    scale = gamma / jnp.sqrt(var + eps)
    bias = beta - mean * scale
    return scale.astype(jnp.float32), bias.astype(jnp.float32)


def _band_weight(w_oihw, scale, W):
    """OIHW 3x3 conv weight -> (3*W*Cin, W*Cout) banded matrix; folds BN scale.

    Row index = kh*(W*Cin) + win*Cin + ci ; col index = wout*Cout + co, with a
    nonzero entry iff win == wout + kw - 1 for some kw.  Out-of-range kw taps
    have no rows, which encodes the zero padding along W (no lane halo needed).
    """
    w = jnp.transpose(w_oihw, (2, 3, 1, 0)).astype(jnp.float32)   # (3,3,Cin,Cout)
    w = w * scale.reshape(1, 1, 1, -1)                            # fold BN scale
    bands = []
    for kh in range(3):
        band = sum(jnp.kron(jnp.eye(W, k=1 - kw, dtype=jnp.float32), w[kh, kw])
                   for kw in range(3))                            # (W*Cin, W*Cout)
        bands.append(band)
    return jnp.concatenate(bands, axis=0)                         # (3*W*Cin, W*Cout)


def _pick_batch_tile(N, H):
    """Largest divisor B of N with B*H <= 256 matmul rows; keep >=2 grid steps
    (v7x: two TensorCores) unless the whole batch already fits one tile."""
    divisors = [b for b in range(1, N + 1) if N % b == 0]
    cand = [b for b in divisors if b * H <= 256] or [1]
    b = max(cand)
    if N // b < 2 and N * H > 256:
        smaller = [c for c in cand if N // c >= 2]
        if smaller:
            b = max(smaller)
    return b


def make_basic_block(params, x_shape, eps=1e-5):
    """Build a jitted BasicBlock forward for NCHW input of static shape x_shape."""
    N, C, H, W = x_shape
    WC = W * C

    scale1, bias1 = _fold_bn(params["bn1_gamma"], params["bn1_beta"],
                             params["bn1_mean"], params["bn1_var"], eps)
    scale2, bias2 = _fold_bn(params["bn2_gamma"], params["bn2_beta"],
                             params["bn2_mean"], params["bn2_var"], eps)
    # Precomputed once; bf16 matmul operands, f32 biases.
    w1 = _band_weight(params["conv1_w"], scale1, W).astype(jnp.bfloat16)  # (3*WC, WC)
    w2 = _band_weight(params["conv2_w"], scale2, W).astype(jnp.bfloat16)
    b1 = jnp.tile(bias1, W).reshape(1, WC)
    b2 = jnp.tile(bias2, W).reshape(1, WC)

    B = _pick_batch_tile(N, H)

    call = pl.pallas_call(
        functools.partial(_basic_block_kernel, B=B, H=H, W=W, C=C),
        out_shape=jax.ShapeDtypeStruct((N, H, WC), jnp.float32),
        grid_spec=pltpu.PrefetchScalarGridSpec(
            num_scalar_prefetch=0,
            grid=(N // B,),
            in_specs=[
                pl.BlockSpec((B, H, WC), lambda n: (n, 0, 0)),
                pl.BlockSpec((3 * WC, WC), lambda n: (0, 0)),
                pl.BlockSpec((1, WC), lambda n: (0, 0)),
                pl.BlockSpec((3 * WC, WC), lambda n: (0, 0)),
                pl.BlockSpec((1, WC), lambda n: (0, 0)),
            ],
            out_specs=pl.BlockSpec((B, H, WC), lambda n: (n, 0, 0)),
            scratch_shapes=[pltpu.VMEM((B, H + 2, WC), jnp.bfloat16)],
        ),
        compiler_params=pltpu.CompilerParams(dimension_semantics=("parallel",)),
    )

    @jax.jit
    def forward(x_nchw):
        # NCHW -> (N, H, W*C) slab (channels interleaved with W on the lane axis)
        x = jnp.transpose(x_nchw, (0, 2, 3, 1)).reshape(N, H, WC)
        out = call(x, w1, b1, w2, b2)
        return jnp.transpose(out.reshape(N, H, W, C), (0, 3, 1, 2))  # -> NCHW

    return forward


# ---------------------------------------------------------------------------
# Pure-JAX reference (for validation)
# ---------------------------------------------------------------------------
def _reference(x_nchw, params):
    def conv(x, w_oihw):
        return lax.conv_general_dilated(
            x, w_oihw, window_strides=(1, 1), padding=((1, 1), (1, 1)),
            dimension_numbers=("NCHW", "OIHW", "NCHW"))

    def bn(x, g, b, m, v, eps=1e-5):
        g = g.reshape(1, -1, 1, 1); b = b.reshape(1, -1, 1, 1)
        m = m.reshape(1, -1, 1, 1); v = v.reshape(1, -1, 1, 1)
        return (x - m) / jnp.sqrt(v + eps) * g + b

    h = jnp.maximum(bn(conv(x_nchw, params["conv1_w"]),
                       params["bn1_gamma"], params["bn1_beta"],
                       params["bn1_mean"], params["bn1_var"]), 0.0)
    h = bn(conv(h, params["conv2_w"]),
           params["bn2_gamma"], params["bn2_beta"],
           params["bn2_mean"], params["bn2_var"])
    return jnp.maximum(h + x_nchw, 0.0)


# ---------------------------------------------------------------------------
# Main
# ---------------------------------------------------------------------------
if __name__ == "__main__":
    N, C, H, W = 2, 4, 16, 16          # inplanes = planes = 4, stride = 1, no downsample
    key = jax.random.PRNGKey(0)
    ks = jax.random.split(key, 8)

    params = {
        "conv1_w": 0.1 * jax.random.normal(ks[0], (C, C, 3, 3), jnp.float32),  # OIHW
        "conv2_w": 0.1 * jax.random.normal(ks[1], (C, C, 3, 3), jnp.float32),
        "bn1_gamma": 1.0 + 0.1 * jax.random.normal(ks[2], (C,), jnp.float32),
        "bn1_beta": 0.1 * jax.random.normal(ks[3], (C,), jnp.float32),
        "bn1_mean": 0.05 * jax.random.normal(ks[4], (C,), jnp.float32),
        "bn1_var": jnp.abs(jax.random.normal(ks[5], (C,), jnp.float32)) + 0.5,
        "bn2_gamma": 1.0 + 0.1 * jax.random.normal(ks[6], (C,), jnp.float32),
        "bn2_beta": 0.1 * jax.random.normal(ks[7], (C,), jnp.float32),
        "bn2_mean": jnp.zeros((C,), jnp.float32),
        "bn2_var": jnp.ones((C,), jnp.float32),
    }

    x = jax.random.normal(jax.random.PRNGKey(42), (N, C, H, W), jnp.float32)

    forward = make_basic_block(params, x.shape)
    out = jax.block_until_ready(forward(x))
    ref = jax.block_until_ready(_reference(x, params))

    assert out.shape == (N, C, H, W)
    max_err = float(jnp.max(jnp.abs(out - ref)))
    # bf16 MXU operands (f32 accumulation / epilogue) -> bf16-appropriate tolerance.
    assert jnp.allclose(out, ref, atol=3e-2, rtol=3e-2), max_err
    print("KERNEL_OK")
</pallas_src>

<mosaic_0001>
module attributes {stable_mosaic.version = 11 : i64} {
  func.func @_basic_block_kernel(%arg0: i32, %arg1: memref<2x16x64xf32, #tpu.memory_space<vmem>>, %arg2: memref<192x64xbf16, #tpu.memory_space<vmem>>, %arg3: memref<1x64xf32, #tpu.memory_space<vmem>>, %arg4: memref<192x64xbf16, #tpu.memory_space<vmem>>, %arg5: memref<1x64xf32, #tpu.memory_space<vmem>>, %arg6: memref<2x16x64xf32, #tpu.memory_space<vmem>>, %arg7: memref<2x18x64xbf16, #tpu.memory_space<vmem>>) attributes {dimension_semantics = [#tpu.dimension_semantics<parallel>], iteration_bounds = array<i64: 1>, scalar_prefetch = 0 : i64, scratch_operands = 1 : i64, tpu.core_type = #tpu.core_type<tc>, window_params = [{transform_indices = @transform_0, window_bounds = array<i64: 2, 16, 64>}, {pipeline_mode = #tpu.pipeline_mode<synchronous>, transform_indices = @transform_1, window_bounds = array<i64: 192, 64>}, {pipeline_mode = #tpu.pipeline_mode<synchronous>, transform_indices = @transform_2, window_bounds = array<i64: 1, 64>}, {pipeline_mode = #tpu.pipeline_mode<synchronous>, transform_indices = @transform_3, window_bounds = array<i64: 192, 64>}, {pipeline_mode = #tpu.pipeline_mode<synchronous>, transform_indices = @transform_4, window_bounds = array<i64: 1, 64>}, {transform_indices = @transform_5, window_bounds = array<i64: 2, 16, 64>}]} {
    %c0_i32 = arith.constant 0 : i32
    %0 = arith.cmpi eq, %arg0, %c0_i32 : i32
    %1 = arith.extui %0 : i1 to i32
    %c0_i32_0 = arith.constant 0 : i32
    %2 = arith.cmpi ne, %1, %c0_i32_0 : i32
    scf.if %2 {
      %cst_39 = arith.constant 0.000000e+00 : bf16
      %37 = vector.broadcast %cst_39 : bf16 to vector<2x18x64xbf16>
      %c0_40 = arith.constant 0 : index
      %c0_41 = arith.constant 0 : index
      %c0_42 = arith.constant 0 : index
      %38 = vector.load %arg7[%c0_40, %c0_41, %c0_42] : memref<2x18x64xbf16, #tpu.memory_space<vmem>>, vector<2x18x64xbf16>
      tpu.vector_store %arg7[%c0_40, %c0_41, %c0_42], %37 {strides = array<i32>} : memref<2x18x64xbf16, #tpu.memory_space<vmem>>, vector<2x18x64xbf16>,
    } else {
    }
    %c0 = arith.constant 0 : index
    %c0_1 = arith.constant 0 : index
    %c0_2 = arith.constant 0 : index
    %3 = vector.load %arg1[%c0, %c0_1, %c0_2] : memref<2x16x64xf32, #tpu.memory_space<vmem>>, vector<2x16x64xf32>
    %4 = arith.truncf %3 : vector<2x16x64xf32> to vector<2x16x64xbf16>
    %c0_3 = arith.constant 0 : index
    %c1 = arith.constant 1 : index
    %c0_4 = arith.constant 0 : index
    %5 = vector.load %arg7[%c0_3, %c1, %c0_4] : memref<2x18x64xbf16, #tpu.memory_space<vmem>>, vector<2x16x64xbf16>
    tpu.vector_store %arg7[%c0_3, %c1, %c0_4], %4 {strides = array<i32>} : memref<2x18x64xbf16, #tpu.memory_space<vmem>>, vector<2x16x64xbf16>,
    %c0_5 = arith.constant 0 : index
    %c0_6 = arith.constant 0 : index
    %c0_7 = arith.constant 0 : index
    %6 = vector.load %arg7[%c0_5, %c0_6, %c0_7] : memref<2x18x64xbf16, #tpu.memory_space<vmem>>, vector<2x16x64xbf16>
    %c0_8 = arith.constant 0 : index
    %c1_9 = arith.constant 1 : index
    %c0_10 = arith.constant 0 : index
    %7 = vector.load %arg7[%c0_8, %c1_9, %c0_10] : memref<2x18x64xbf16, #tpu.memory_space<vmem>>, vector<2x16x64xbf16>
    %c0_11 = arith.constant 0 : index
    %c2 = arith.constant 2 : index
    %c0_12 = arith.constant 0 : index
    %8 = vector.load %arg7[%c0_11, %c2, %c0_12] : memref<2x18x64xbf16, #tpu.memory_space<vmem>>, vector<2x16x64xbf16>
    %9 = tpu.concatenate %6, %7, %8 in 2 : vector<2x16x64xbf16>, vector<2x16x64xbf16>, vector<2x16x64xbf16> -> vector<2x16x192xbf16>
    %10 = vector.shape_cast %9 : vector<2x16x192xbf16> to vector<32x192xbf16>
    %c0_13 = arith.constant 0 : index
    %c0_14 = arith.constant 0 : index
    %11 = vector.load %arg2[%c0_13, %c0_14] : memref<192x64xbf16, #tpu.memory_space<vmem>>, vector<192x64xbf16>
    %cst = arith.constant dense<0.000000e+00> : vector<32x64xf32>
    %12 = tpu.matmul %10, %11, %cst {dimension_numbers = #tpu.dot_dimension_numbers<[1], [0], [0], [1], [0, 0, 1, 1], [], []>} : vector<32x192xbf16>, vector<192x64xbf16>, vector<32x64xf32> -> vector<32x64xf32>
    %c0_15 = arith.constant 0 : index
    %c0_16 = arith.constant 0 : index
    %13 = vector.load %arg3[%c0_15, %c0_16] : memref<1x64xf32, #tpu.memory_space<vmem>>, vector<1x64xf32>
    %14 = vector.broadcast %13 : vector<1x64xf32> to vector<32x64xf32>
    %15 = arith.addf %12, %14 : vector<32x64xf32>
    %cst_17 = arith.constant 0.000000e+00 : f32
    %16 = vector.broadcast %cst_17 : f32 to vector<32x64xf32>
    %17 = arith.maximumf %15, %16 : vector<32x64xf32>
    %18 = arith.truncf %17 : vector<32x64xf32> to vector<32x64xbf16>
    %19 = vector.shape_cast %18 : vector<32x64xbf16> to vector<2x16x64xbf16>
    %c0_18 = arith.constant 0 : index
    %c1_19 = arith.constant 1 : index
    %c0_20 = arith.constant 0 : index
    %20 = vector.load %arg7[%c0_18, %c1_19, %c0_20] : memref<2x18x64xbf16, #tpu.memory_space<vmem>>, vector<2x16x64xbf16>
    tpu.vector_store %arg7[%c0_18, %c1_19, %c0_20], %19 {strides = array<i32>} : memref<2x18x64xbf16, #tpu.memory_space<vmem>>, vector<2x16x64xbf16>,
    %c0_21 = arith.constant 0 : index
    %c0_22 = arith.constant 0 : index
    %c0_23 = arith.constant 0 : index
    %21 = vector.load %arg7[%c0_21, %c0_22, %c0_23] : memref<2x18x64xbf16, #tpu.memory_space<vmem>>, vector<2x16x64xbf16>
    %c0_24 = arith.constant 0 : index
    %c1_25 = arith.constant 1 : index
    %c0_26 = arith.constant 0 : index
    %22 = vector.load %arg7[%c0_24, %c1_25, %c0_26] : memref<2x18x64xbf16, #tpu.memory_space<vmem>>, vector<2x16x64xbf16>
    %c0_27 = arith.constant 0 : index
    %c2_28 = arith.constant 2 : index
    %c0_29 = arith.constant 0 : index
    %23 = vector.load %arg7[%c0_27, %c2_28, %c0_29] : memref<2x18x64xbf16, #tpu.memory_space<vmem>>, vector<2x16x64xbf16>
    %24 = tpu.concatenate %21, %22, %23 in 2 : vector<2x16x64xbf16>, vector<2x16x64xbf16>, vector<2x16x64xbf16> -> vector<2x16x192xbf16>
    %25 = vector.shape_cast %24 : vector<2x16x192xbf16> to vector<32x192xbf16>
    %c0_30 = arith.constant 0 : index
    %c0_31 = arith.constant 0 : index
    %26 = vector.load %arg4[%c0_30, %c0_31] : memref<192x64xbf16, #tpu.memory_space<vmem>>, vector<192x64xbf16>
    %cst_32 = arith.constant dense<0.000000e+00> : vector<32x64xf32>
    %27 = tpu.matmul %25, %26, %cst_32 {dimension_numbers = #tpu.dot_dimension_numbers<[1], [0], [0], [1], [0, 0, 1, 1], [], []>} : vector<32x192xbf16>, vector<192x64xbf16>, vector<32x64xf32> -> vector<32x64xf32>
    %c0_33 = arith.constant 0 : index
    %c0_34 = arith.constant 0 : index
    %28 = vector.load %arg5[%c0_33, %c0_34] : memref<1x64xf32, #tpu.memory_space<vmem>>, vector<1x64xf32>
    %29 = vector.broadcast %28 : vector<1x64xf32> to vector<32x64xf32>
    %30 = arith.addf %27, %29 : vector<32x64xf32>
    %31 = vector.shape_cast %3 : vector<2x16x64xf32> to vector<32x64xf32>
    %32 = arith.addf %30, %31 : vector<32x64xf32>
    %cst_35 = arith.constant 0.000000e+00 : f32
    %33 = vector.broadcast %cst_35 : f32 to vector<32x64xf32>
    %34 = arith.maximumf %32, %33 : vector<32x64xf32>
    %35 = vector.shape_cast %34 : vector<32x64xf32> to vector<2x16x64xf32>
    %c0_36 = arith.constant 0 : index
    %c0_37 = arith.constant 0 : index
    %c0_38 = arith.constant 0 : index
    %36 = vector.load %arg6[%c0_36, %c0_37, %c0_38] : memref<2x16x64xf32, #tpu.memory_space<vmem>>, vector<2x16x64xf32>
    tpu.vector_store %arg6[%c0_36, %c0_37, %c0_38], %35 {strides = array<i32>} : memref<2x16x64xf32, #tpu.memory_space<vmem>>, vector<2x16x64xf32>,
    return
  }
  func.func @transform_0(%arg0: i32) -> (i32, i32, i32) {
    %c0_i32 = arith.constant 0 : i32
    %c0_i32_0 = arith.constant 0 : i32
    %c0_i32_1 = arith.constant 0 : i32
    return %arg0, %c0_i32, %c0_i32_0 : i32, i32, i32
  }
  func.func @transform_1(%arg0: i32) -> (i32, i32) {
    %c0_i32 = arith.constant 0 : i32
    %c0_i32_0 = arith.constant 0 : i32
    %c0_i32_1 = arith.constant 0 : i32
    return %c0_i32, %c0_i32_0 : i32, i32
  }
  func.func @transform_2(%arg0: i32) -> (i32, i32) {
    %c0_i32 = arith.constant 0 : i32
    %c0_i32_0 = arith.constant 0 : i32
    %c0_i32_1 = arith.constant 0 : i32
    return %c0_i32, %c0_i32_0 : i32, i32
  }
  func.func @transform_3(%arg0: i32) -> (i32, i32) {
    %c0_i32 = arith.constant 0 : i32
    %c0_i32_0 = arith.constant 0 : i32
    %c0_i32_1 = arith.constant 0 : i32
    return %c0_i32, %c0_i32_0 : i32, i32
  }
  func.func @transform_4(%arg0: i32) -> (i32, i32) {
    %c0_i32 = arith.constant 0 : i32
    %c0_i32_0 = arith.constant 0 : i32
    %c0_i32_1 = arith.constant 0 : i32
    return %c0_i32, %c0_i32_0 : i32, i32
  }
  func.func @transform_5(%arg0: i32) -> (i32, i32, i32) {
    %c0_i32 = arith.constant 0 : i32
    %c0_i32_0 = arith.constant 0 : i32
    %c0_i32_1 = arith.constant 0 : i32
    return %arg0, %c0_i32, %c0_i32_0 : i32, i32, i32
  }
}

</mosaic_0001>

<llo_original>
// kernel: forward.1
$region0: #{forward.1}
  #allocation0 [shape = 'u32[]', space=smem, size = 0x4, offset = 0x4, fixed_abs, tag = 'smem constant byte address 0x4 - core index']
  #allocation1 [shape = 'u32[144,128]{1,0:T(1,128)}', space=vmem, size = 0x12000, scoped, tag = 'internal scratch']
  #allocation2 [shape = 'bf16[2,18,64]{2,1,0:T(8,128)(2,1)}', space=vmem, size = 0x3000, scoped, tag = 'scratch operand']
  %s0 = inlined_call_operand.vmem [shape: f32[2,16,64], index: 0, kind: input, shape index: {}]
  %s1 = inlined_call_operand.vmem [shape: bf16[192,64], index: 1, kind: input, shape index: {}]
  %s2 = inlined_call_operand.vmem [shape: f32[1,64], index: 2, kind: input, shape index: {}]
  %s3 = inlined_call_operand.vmem [shape: bf16[192,64], index: 3, kind: input, shape index: {}]
  %s4 = inlined_call_operand.vmem [shape: f32[1,64], index: 4, kind: input, shape index: {}]
  %s5 = inlined_call_operand.vmem [shape: f32[2,16,64], index: 5, kind: output, shape index: {}]
  %s6 = sld [smem:[#allocation0]]
  $region34: #{forward.1} parent=0
    _
  %s8 = ssub.s32 1, %s6
  %s9 = scalar_select 0, %s8, %s6
  // Predicated region
  $region2: #{forward.1} parent=0 // pred_check
    _
  $region3: #{forward.1} parent=0 // pred_check_branch
    %11 = sbr.rel (0) target = $region5
  $region4: #{forward.1} parent=0 // pred_region
    _
  $region5: #{forward.1} parent=0 // pred_fallthru
    _
  // Predicated region
  $region6: #{forward.1} parent=0 // pred_check
    _
  $region7: #{forward.1} parent=0 // pred_check_branch
    %13 = sbr.rel (0) target = $region9
  $region8: #{forward.1} parent=0 // pred_region
    _
  $region9: #{forward.1} parent=0 // pred_fallthru
    _
  // Predicated region
  $region10: #{forward.1} parent=0 // pred_check
    _
  $region11: #{forward.1} parent=0 // pred_check_branch
    %15 = sbr.rel (0) target = $region13
  $region12: #{forward.1} parent=0 // pred_region
    _
  $region13: #{forward.1} parent=0 // pred_fallthru
    _
  // Predicated region
  $region14: #{forward.1} parent=0 // pred_check
    _
  $region15: #{forward.1} parent=0 // pred_check_branch
    %17 = sbr.rel (0) target = $region17
  $region16: #{forward.1} parent=0 // pred_region
    _
  $region17: #{forward.1} parent=0 // pred_fallthru
    _
  // Predicated region
  $region18: #{forward.1} parent=0 // pred_check
    _
  $region19: #{forward.1} parent=0 // pred_check_branch
    %19 = sbr.rel (0) target = $region21
  $region20: #{forward.1} parent=0 // pred_region
    _
  $region21: #{forward.1} parent=0 // pred_fallthru
    _
  %p21 = scmp.eq.s32.totalorder 0, 0
  // Predicated region
  $region22: #{forward.1} parent=0 // pred_check
    %p22 = pneg %p21
  $region23: #{forward.1} parent=0 // pred_check_branch
    %24 = sbr.rel (%p22) target = $region25
  $region24: #{forward.1} parent=0 // pred_region
    %vm25 = vcmask 519168
    %26 = vst.msk [vmem:[#allocation2] sm:$0xf] %vm25, 0
    %27 = vst.msk [vmem:[#allocation2 + $0x4] sm:$0xf] %vm25, 0
    %vm28 = vcmask 516096
    %29 = vst.msk [vmem:[#allocation2 + $0x8] sm:$0x1] %vm28, 0
    %30 = vst.msk [vmem:[#allocation2 + $0xc] sm:$0xf] %vm25, 0
    %31 = vst.msk [vmem:[#allocation2 + $0x10] sm:$0xf] %vm25, 0
    %32 = vst.msk [vmem:[#allocation2 + $0x14] sm:$0x1] %vm28, 0
  $region25: #{forward.1} parent=0 // pred_fallthru
    _
  %v33 = vld [vmem:[%s0] sm:$0xff]
  %v34 = vld [vmem:[%s0 + $0x8] sm:$0xff]
  %v35 = vld [vmem:[%s0 + $0x10] sm:$0xff]
  %v36 = vld [vmem:[%s0 + $0x18] sm:$0xff]
  %v37 = vpack.c.bf16 %v34, %v33
  %v38 = vpack.c.bf16 %v36, %v35
  %v41 = vunpack.c.l.b16 %v37
  %v42 = vunpack.c.h.b16 %v37
  %v43 = vunpack.c.l.b16 %v38
  %v44 = vunpack.c.h.b16 %v38
  %v45 = vpack.c.b16 %v41, %v41
  %v46 = vpack.c.b16 %v42, %v42
  %v47 = vpack.c.b16 %v43, %v43
  %v48 = vpack.c.b16 %v44, %v44
  %vm49 = vsmask.f32 256
  %vm50 = vsmask.f32 4368
  %vm51 = vmor %vm49, %vm50
  %v53 = vshrl.u32 %v45, 16
  %v55 = vrot.slane %v53, 7
  %v56 = vshll.u32 %v45, 16
  %v58 = vor.u32 %v55, %v56
  %v59 = vrot.slane %v55, 4
  %v61 = vshrl.u32 %v46, 16
  %v63 = vrot.slane %v61, 7
  %v64 = vshll.u32 %v46, 16
  %v66 = vor.u32 %v63, %v64
  %v67 = vsel %vm51, %v59, %v66
  %v68 = vrot.slane %v63, 4
  %v70 = vshrl.u32 %v47, 16
  %v72 = vrot.slane %v70, 7
  %v73 = vshll.u32 %v47, 16
  %v75 = vor.u32 %v72, %v73
  %v76 = vrot.slane %v72, 4
  %v78 = vshrl.u32 %v48, 16
  %v80 = vrot.slane %v78, 7
  %v81 = vshll.u32 %v48, 16
  %v83 = vor.u32 %v80, %v81
  %v84 = vsel %vm51, %v76, %v83
  %v85 = vrot.slane %v80, 4
  %vm92 = vcmask 519168
  %vm93 = vsmask.f32 7938
  %vm94 = vmand %vm92, %vm93
  %v95 = vld [vmem:[#allocation2] sm:$0xf]
  %v96 = vsel %vm94, %v58, %v95
  %97 = vst [vmem:[#allocation2] sm:$0xf] %v96
  %vm98 = vcmask 519168
  %99 = vst.msk [vmem:[#allocation2 + $0x4] sm:$0xf] %vm98, %v67
  %vm100 = vcmask 516096
  %vm101 = vmand %vm100, %vm49
  %v102 = vld [vmem:[#allocation2 + $0x8] sm:$0x1]
  %v103 = vsel %vm101, %v68, %v102
  %104 = vst [vmem:[#allocation2 + $0x8] sm:$0x1] %v103
  %v105 = vld [vmem:[#allocation2 + $0xc] sm:$0xf]
  %v106 = vsel %vm94, %v75, %v105
  %107 = vst [vmem:[#allocation2 + $0xc] sm:$0xf] %v106
  %108 = vst.msk [vmem:[#allocation2 + $0x10] sm:$0xf] %vm98, %v84
  %v109 = vld [vmem:[#allocation2 + $0x14] sm:$0x1]
  %v110 = vsel %vm101, %v85, %v109
  %111 = vst [vmem:[#allocation2 + $0x14] sm:$0x1] %v110
  %v112 = vld [vmem:[#allocation2] sm:$0xf]
  %v113 = vld [vmem:[#allocation2 + $0x4] sm:$0xf]
  %v114 = vld [vmem:[#allocation2 + $0xc] sm:$0xf]
  %v115 = vld [vmem:[#allocation2 + $0x10] sm:$0xf]
  %v116 = vld [vmem:[#allocation2 + $0x8] sm:$0x1]
  %v117 = vld [vmem:[#allocation2 + $0x14] sm:$0x1]
  %v118 = vld [vmem:[#allocation2] sm:$0xe]
  %v119 = vld [vmem:[#allocation2 + $0xc] sm:$0xe]
  %v124 = vunpack.c.l.b16 %v112
  %v125 = vunpack.c.l.b16 %v113
  %v126 = vunpack.c.l.b16 %v114
  %v127 = vunpack.c.l.b16 %v115
  %v128 = vpack.c.b16 %v125, %v124
  %v129 = vpack.c.b16 %v127, %v126
  %v132 = vunpack.c.l.b16 %v116
  %v133 = vunpack.c.l.b16 %v117
  %v134 = vpack.c.b16 %v132, %v132
  %v135 = vpack.c.b16 %v133, %v133
  %vm136 = vsmask.f32 7424
  %v138 = vshrl.u32 %v128, 16
  %v140 = vshll.u32 %v128, 16
  %v142 = vrot.slane %v140, 1
  %v143 = vor.u32 %v138, %v142
  %v145 = vshll.u32 %v134, 16
  %v147 = vrot.slane %v145, 1
  %v148 = vsel %vm136, %v143, %v147
  %v150 = vshrl.u32 %v129, 16
  %v152 = vshll.u32 %v129, 16
  %v154 = vrot.slane %v152, 1
  %v155 = vor.u32 %v150, %v154
  %v157 = vshll.u32 %v135, 16
  %v159 = vrot.slane %v157, 1
  %v160 = vsel %vm136, %v155, %v159
  %161 = vrot.lane.b32.xlu0 %v148, 64
  %v162 = vpop.permute.xlu0 %161
  %163 = vrot.lane.b32.xlu0 %v160, 64
  %v164 = vpop.permute.xlu0 %163
  %v167 = vunpack.c.l.b16 %v118
  %v168 = vunpack.c.l.b16 %v119
  %v169 = vpack.c.b16 %v125, %v167
  %v170 = vpack.c.b16 %v127, %v168
  %vm171 = vcmask 1046528
  %v172 = vrot.slane %v169, 1
  %v173 = vrot.slane %v134, 1
  %v174 = vsel %vm171, %v172, %v173
  %v175 = vrot.slane %v170, 1
  %v176 = vrot.slane %v135, 1
  %v177 = vsel %vm171, %v175, %v176
  %vm178 = vcmask 523264
  %v180 = vsel %vm178, %v128, %v162
  %v183 = vsel %vm178, %v129, %v164
  %v185 = vld [vmem:[%s1] sm:$0xf]
  %v186 = vld [vmem:[%s1 + $0x4] sm:$0xf]
  %v187 = vld [vmem:[%s1 + $0x8] sm:$0xf]
  %v188 = vld [vmem:[%s1 + $0xc] sm:$0xf]
  %v189 = vld [vmem:[%s1 + $0x10] sm:$0xf]
  %v190 = vld [vmem:[%s1 + $0x14] sm:$0xf]
  %v191 = vld [vmem:[%s1 + $0x18] sm:$0xf]
  %v192 = vld [vmem:[%s1 + $0x1c] sm:$0xf]
  %v193 = vld [vmem:[%s1 + $0x20] sm:$0xf]
  %v194 = vld [vmem:[%s1 + $0x24] sm:$0xf]
  %v195 = vld [vmem:[%s1 + $0x28] sm:$0xf]
  %v196 = vld [vmem:[%s1 + $0x2c] sm:$0xf]
  %v197 = vld [vmem:[%s1 + $0x30] sm:$0xf]
  %v198 = vld [vmem:[%s1 + $0x34] sm:$0xf]
  %v199 = vld [vmem:[%s1 + $0x38] sm:$0xf]
  %v200 = vld [vmem:[%s1 + $0x3c] sm:$0xf]
  %v201 = vld [vmem:[%s1 + $0x40] sm:$0xf]
  %v202 = vld [vmem:[%s1 + $0x44] sm:$0xf]
  %v203 = vld [vmem:[%s1 + $0x48] sm:$0xf]
  %v204 = vld [vmem:[%s1 + $0x4c] sm:$0xf]
  %v205 = vld [vmem:[%s1 + $0x50] sm:$0xf]
  %v206 = vld [vmem:[%s1 + $0x54] sm:$0xf]
  %v207 = vld [vmem:[%s1 + $0x58] sm:$0xf]
  %v208 = vld [vmem:[%s1 + $0x5c] sm:$0xf]
  %v209 = vld [vmem:[%s2] sm:$0x1]
  %v211 = vlaneseq
  %v212 = vshrl.u32 %v211, 7
  %v213 = vsub.s32 0, %v212
  %v214 = vrot.slane %v209, %v213
  %v240 = vunpack.c.l.b16 %v185
  %v241 = vunpack.c.l.b16 %v186
  %v242 = vunpack.c.l.b16 %v187
  %v243 = vunpack.c.l.b16 %v188
  %v244 = vunpack.c.l.b16 %v189
  %v245 = vunpack.c.l.b16 %v190
  %v246 = vunpack.c.l.b16 %v191
  %v247 = vunpack.c.l.b16 %v192
  %v248 = vunpack.c.l.b16 %v193
  %v249 = vunpack.c.l.b16 %v194
  %v250 = vunpack.c.l.b16 %v195
  %v251 = vunpack.c.l.b16 %v196
  %v252 = vunpack.c.l.b16 %v197
  %v253 = vunpack.c.l.b16 %v198
  %v254 = vunpack.c.l.b16 %v199
  %v255 = vunpack.c.l.b16 %v200
  %v256 = vunpack.c.l.b16 %v201
  %v257 = vunpack.c.l.b16 %v202
  %v258 = vunpack.c.l.b16 %v203
  %v259 = vunpack.c.l.b16 %v204
  %v260 = vunpack.c.l.b16 %v205
  %v261 = vunpack.c.l.b16 %v206
  %v262 = vunpack.c.l.b16 %v207
  %v263 = vunpack.c.l.b16 %v208
  %v264 = vpack.c.b16 %v241, %v240
  %v265 = vpack.c.b16 %v243, %v242
  %v266 = vpack.c.b16 %v245, %v244
  %v267 = vpack.c.b16 %v247, %v246
  %v268 = vpack.c.b16 %v249, %v248
  %v269 = vpack.c.b16 %v251, %v250
  %v270 = vpack.c.b16 %v253, %v252
  %v271 = vpack.c.b16 %v255, %v254
  %v272 = vpack.c.b16 %v257, %v256
  %v273 = vpack.c.b16 %v259, %v258
  %v274 = vpack.c.b16 %v261, %v260
  %v275 = vpack.c.b16 %v263, %v262
  %v289 = vsel %vm178, %v174, 0
  %v292 = vsel %vm178, %v177, 0
  %294 = vmatprep.subr.bf16.mxu0 0
  %295 = vmatpush1.bf16.msra.mxu0 %v264
  %296 = vmatprep.subr.bf16.mxu0 0
  %297 = vmatpush1.bf16.msra.mxu0 %v265
  %298 = vmatprep.subr.bf16.mxu0 0
  %299 = vmatpush1.bf16.msra.mxu0 %v266
  %300 = vmatprep.subr.bf16.mxu0 0
  %301 = vmatpush1.bf16.msra.mxu0 %v267
  %302 = vmatprep.subr.bf16.mxu0 0
  %303 = vmatpush1.bf16.msra.mxu0 %v268
  %304 = vmatprep.subr.bf16.mxu0 0
  %305 = vmatpush1.bf16.msra.mxu0 %v269
  %306 = vmatprep.subr.bf16.mxu0 0
  %307 = vmatpush1.bf16.msra.mxu0 %v270
  %308 = vmatprep.subr.bf16.mxu0 0
  %309 = vmatpush1.bf16.msra.mxu0 %v271
  %310 = vmatprep.subr.bf16.mxu0 0
  %311 = vmatpush1.bf16.msra.mxu0 %v272
  %312 = vmatprep.subr.bf16.mxu0 0
  %313 = vmatpush1.bf16.msra.mxu0 %v273
  %314 = vmatprep.subr.bf16.mxu0 0
  %315 = vmatpush1.bf16.msra.mxu0 %v274
  %316 = vmatprep.subr.bf16.mxu0 0
  %317 = vmatpush1.bf16.msra.mxu0 %v275
  %318 = vmatprep.subr.bf16.mxu0 0
  %319 = vmatpush1.bf16.msra.mxu0 0
  %320 = vmatprep.subr.bf16.mxu0 0
  %321 = vmatpush1.bf16.msra.mxu0 0
  %322 = vmatprep.subr.bf16.mxu0 0
  %323 = vmatpush1.bf16.msra.mxu0 0
  %324 = vmatprep.subr.bf16.mxu0 0
  %325 = vmatpush1.bf16.msra.mxu0 0
  %326 = vmatprep.mubr.bf16.mxu0 %v289
  %327 = vmatmul.mubr.bf16.gmra.mrb[0].mxu0 %v180
  %v328 = vpop.f32.mrb[0].mxu0
  %v329 = vadd.f32 %v214, %v328
  %v330 = vpop.f32.mrb[0].mxu0
  %v331 = vpop.f32.mrb[0].mxu0
  %v332 = vadd.f32 %v214, %v331
  %v333 = vpop.f32.mrb[0].mxu0
  %334 = vmatprep.mubr.bf16.mxu0 %v292
  %335 = vmatmul.mubr.bf16.gmra.mrb[0].mxu0 %v183
  %v336 = vpop.f32.mrb[0].mxu0
  %v337 = vadd.f32 %v214, %v336
  %v338 = vpop.f32.mrb[0].mxu0
  %v339 = vpop.f32.mrb[0].mxu0
  %v340 = vadd.f32 %v214, %v339
  %v341 = vpop.f32.mrb[0].mxu0
  %342 = vdwg.mxu0
  %v343 = vmax.f32 %v329, 0.0
  %v344 = vmax.f32 %v332, 0.0
  %v345 = vmax.f32 %v337, 0.0
  %v346 = vmax.f32 %v340, 0.0
  %v347 = vpack.c.bf16 %v344, %v343
  %v348 = vpack.c.bf16 %v346, %v345
  %v351 = vunpack.c.l.b16 %v347
  %v352 = vunpack.c.h.b16 %v347
  %v353 = vunpack.c.l.b16 %v348
  %v354 = vunpack.c.h.b16 %v348
  %v355 = vpack.c.b16 %v351, %v351
  %v356 = vpack.c.b16 %v352, %v352
  %v357 = vpack.c.b16 %v353, %v353
  %v358 = vpack.c.b16 %v354, %v354
  %v360 = vshrl.u32 %v355, 16
  %v362 = vrot.slane %v360, 7
  %v363 = vshll.u32 %v355, 16
  %v365 = vor.u32 %v362, %v363
  %v366 = vrot.slane %v362, 4
  %v368 = vshrl.u32 %v356, 16
  %v370 = vrot.slane %v368, 7
  %v371 = vshll.u32 %v356, 16
  %v373 = vor.u32 %v370, %v371
  %v374 = vsel %vm51, %v366, %v373
  %v375 = vrot.slane %v370, 4
  %v377 = vshrl.u32 %v357, 16
  %v379 = vrot.slane %v377, 7
  %v380 = vshll.u32 %v357, 16
  %v382 = vor.u32 %v379, %v380
  %v383 = vrot.slane %v379, 4
  %v385 = vshrl.u32 %v358, 16
  %v387 = vrot.slane %v385, 7
  %v388 = vshll.u32 %v358, 16
  %v390 = vor.u32 %v387, %v388
  %v391 = vsel %vm51, %v383, %v390
  %v392 = vrot.slane %v387, 4
  %v399 = vsel %vm94, %v365, %v112
  %400 = vst [vmem:[#allocation2] sm:$0xf] %v399
  %401 = vst.msk [vmem:[#allocation2 + $0x4] sm:$0xf] %vm98, %v374
  %v402 = vld [vmem:[#allocation2 + $0x8] sm:$0x1]
  %v403 = vsel %vm101, %v375, %v402
  %404 = vst [vmem:[#allocation2 + $0x8] sm:$0x1] %v403
  %v405 = vld [vmem:[#allocation2 + $0xc] sm:$0xf]
  %v406 = vsel %vm94, %v382, %v405
  %407 = vst [vmem:[#allocation2 + $0xc] sm:$0xf] %v406
  %408 = vst.msk [vmem:[#allocation2 + $0x10] sm:$0xf] %vm98, %v391
  %v409 = vld [vmem:[#allocation2 + $0x14] sm:$0x1]
  %v410 = vsel %vm101, %v392, %v409
  %411 = vst [vmem:[#allocation2 + $0x14] sm:$0x1] %v410
  %v412 = vld [vmem:[#allocation2] sm:$0xf]
  %v413 = vld [vmem:[#allocation2 + $0x4] sm:$0xf]
  %v414 = vld [vmem:[#allocation2 + $0xc] sm:$0xf]
  %v415 = vld [vmem:[#allocation2 + $0x10] sm:$0xf]
  %v416 = vld [vmem:[#allocation2 + $0x8] sm:$0x1]
  %v417 = vld [vmem:[#allocation2 + $0x14] sm:$0x1]
  %v418 = vld [vmem:[#allocation2] sm:$0xe]
  %v419 = vld [vmem:[#allocation2 + $0xc] sm:$0xe]
  %v424 = vunpack.c.l.b16 %v412
  %v425 = vunpack.c.l.b16 %v413
  %v426 = vunpack.c.l.b16 %v414
  %v427 = vunpack.c.l.b16 %v415
  %v428 = vpack.c.b16 %v425, %v424
  %v429 = vpack.c.b16 %v427, %v426
  %v432 = vunpack.c.l.b16 %v416
  %v433 = vunpack.c.l.b16 %v417
  %v434 = vpack.c.b16 %v432, %v432
  %v435 = vpack.c.b16 %v433, %v433
  %v437 = vshrl.u32 %v428, 16
  %v439 = vshll.u32 %v428, 16
  %v441 = vrot.slane %v439, 1
  %v442 = vor.u32 %v437, %v441
  %v444 = vshll.u32 %v434, 16
  %v446 = vrot.slane %v444, 1
  %v447 = vsel %vm136, %v442, %v446
  %v449 = vshrl.u32 %v429, 16
  %v451 = vshll.u32 %v429, 16
  %v453 = vrot.slane %v451, 1
  %v454 = vor.u32 %v449, %v453
  %v456 = vshll.u32 %v435, 16
  %v458 = vrot.slane %v456, 1
  %v459 = vsel %vm136, %v454, %v458
  %460 = vrot.lane.b32.xlu0 %v447, 64
  %v461 = vpop.permute.xlu0 %460
  %462 = vrot.lane.b32.xlu0 %v459, 64
  %v463 = vpop.permute.xlu0 %462
  %v466 = vunpack.c.l.b16 %v418
  %v467 = vunpack.c.l.b16 %v419
  %v468 = vpack.c.b16 %v425, %v466
  %v469 = vpack.c.b16 %v427, %v467
  %v470 = vrot.slane %v468, 1
  %v471 = vrot.slane %v434, 1
  %v472 = vsel %vm171, %v470, %v471
  %v473 = vrot.slane %v469, 1
  %v474 = vrot.slane %v435, 1
  %v475 = vsel %vm171, %v473, %v474
  %v477 = vsel %vm178, %v428, %v461
  %v480 = vsel %vm178, %v429, %v463
  %v482 = vld [vmem:[%s3] sm:$0xf]
  %v483 = vld [vmem:[%s3 + $0x4] sm:$0xf]
  %v484 = vld [vmem:[%s3 + $0x8] sm:$0xf]
  %v485 = vld [vmem:[%s3 + $0xc] sm:$0xf]
  %v486 = vld [vmem:[%s3 + $0x10] sm:$0xf]
  %v487 = vld [vmem:[%s3 + $0x14] sm:$0xf]
  %v488 = vld [vmem:[%s3 + $0x18] sm:$0xf]
  %v489 = vld [vmem:[%s3 + $0x1c] sm:$0xf]
  %v490 = vld [vmem:[%s3 + $0x20] sm:$0xf]
  %v491 = vld [vmem:[%s3 + $0x24] sm:$0xf]
  %v492 = vld [vmem:[%s3 + $0x28] sm:$0xf]
  %v493 = vld [vmem:[%s3 + $0x2c] sm:$0xf]
  %v494 = vld [vmem:[%s3 + $0x30] sm:$0xf]
  %v495 = vld [vmem:[%s3 + $0x34] sm:$0xf]
  %v496 = vld [vmem:[%s3 + $0x38] sm:$0xf]
  %v497 = vld [vmem:[%s3 + $0x3c] sm:$0xf]
  %v498 = vld [vmem:[%s3 + $0x40] sm:$0xf]
  %v499 = vld [vmem:[%s3 + $0x44] sm:$0xf]
  %v500 = vld [vmem:[%s3 + $0x48] sm:$0xf]
  %v501 = vld [vmem:[%s3 + $0x4c] sm:$0xf]
  %v502 = vld [vmem:[%s3 + $0x50] sm:$0xf]
  %v503 = vld [vmem:[%s3 + $0x54] sm:$0xf]
  %v504 = vld [vmem:[%s3 + $0x58] sm:$0xf]
  %v505 = vld [vmem:[%s3 + $0x5c] sm:$0xf]
  %v506 = vld [vmem:[%s4] sm:$0x1]
  %v508 = vlaneseq
  %v509 = vshrl.u32 %v508, 7
  %v510 = vsub.s32 0, %v509
  %v511 = vrot.slane %v506, %v510
  %v537 = vunpack.c.l.b16 %v482
  %v538 = vunpack.c.l.b16 %v483
  %v539 = vunpack.c.l.b16 %v484
  %v540 = vunpack.c.l.b16 %v485
  %v541 = vunpack.c.l.b16 %v486
  %v542 = vunpack.c.l.b16 %v487
  %v543 = vunpack.c.l.b16 %v488
  %v544 = vunpack.c.l.b16 %v489
  %v545 = vunpack.c.l.b16 %v490
  %v546 = vunpack.c.l.b16 %v491
  %v547 = vunpack.c.l.b16 %v492
  %v548 = vunpack.c.l.b16 %v493
  %v549 = vunpack.c.l.b16 %v494
  %v550 = vunpack.c.l.b16 %v495
  %v551 = vunpack.c.l.b16 %v496
  %v552 = vunpack.c.l.b16 %v497
  %v553 = vunpack.c.l.b16 %v498
  %v554 = vunpack.c.l.b16 %v499
  %v555 = vunpack.c.l.b16 %v500
  %v556 = vunpack.c.l.b16 %v501
  %v557 = vunpack.c.l.b16 %v502
  %v558 = vunpack.c.l.b16 %v503
  %v559 = vunpack.c.l.b16 %v504
  %v560 = vunpack.c.l.b16 %v505
  %v561 = vpack.c.b16 %v538, %v537
  %v562 = vpack.c.b16 %v540, %v539
  %v563 = vpack.c.b16 %v542, %v541
  %v564 = vpack.c.b16 %v544, %v543
  %v565 = vpack.c.b16 %v546, %v545
  %v566 = vpack.c.b16 %v548, %v547
  %v567 = vpack.c.b16 %v550, %v549
  %v568 = vpack.c.b16 %v552, %v551
  %v569 = vpack.c.b16 %v554, %v553
  %v570 = vpack.c.b16 %v556, %v555
  %v571 = vpack.c.b16 %v558, %v557
  %v572 = vpack.c.b16 %v560, %v559
  %v586 = vsel %vm178, %v472, 0
  %v589 = vsel %vm178, %v475, 0
  %591 = vmatprep.subr.bf16.mxu0 0
  %592 = vmatpush1.bf16.msra.mxu0 %v561
  %593 = vmatprep.subr.bf16.mxu0 0
  %594 = vmatpush1.bf16.msra.mxu0 %v562
  %595 = vmatprep.subr.bf16.mxu0 0
  %596 = vmatpush1.bf16.msra.mxu0 %v563
  %597 = vmatprep.subr.bf16.mxu0 0
  %598 = vmatpush1.bf16.msra.mxu0 %v564
  %599 = vmatprep.subr.bf16.mxu0 0
  %600 = vmatpush1.bf16.msra.mxu0 %v565
  %601 = vmatprep.subr.bf16.mxu0 0
  %602 = vmatpush1.bf16.msra.mxu0 %v566
  %603 = vmatprep.subr.bf16.mxu0 0
  %604 = vmatpush1.bf16.msra.mxu0 %v567
  %605 = vmatprep.subr.bf16.mxu0 0
  %606 = vmatpush1.bf16.msra.mxu0 %v568
  %607 = vmatprep.subr.bf16.mxu0 0
  %608 = vmatpush1.bf16.msra.mxu0 %v569
  %609 = vmatprep.subr.bf16.mxu0 0
  %610 = vmatpush1.bf16.msra.mxu0 %v570
  %611 = vmatprep.subr.bf16.mxu0 0
  %612 = vmatpush1.bf16.msra.mxu0 %v571
  %613 = vmatprep.subr.bf16.mxu0 0
  %614 = vmatpush1.bf16.msra.mxu0 %v572
  %615 = vmatprep.subr.bf16.mxu0 0
  %616 = vmatpush1.bf16.msra.mxu0 0
  %617 = vmatprep.subr.bf16.mxu0 0
  %618 = vmatpush1.bf16.msra.mxu0 0
  %619 = vmatprep.subr.bf16.mxu0 0
  %620 = vmatpush1.bf16.msra.mxu0 0
  %621 = vmatprep.subr.bf16.mxu0 0
  %622 = vmatpush1.bf16.msra.mxu0 0
  %623 = vmatprep.mubr.bf16.mxu0 %v586
  %624 = vmatmul.mubr.bf16.gmra.mrb[0].mxu0 %v477
  %v625 = vpop.f32.mrb[0].mxu0
  %v626 = vadd.f32 %v511, %v625
  %v627 = vpop.f32.mrb[0].mxu0
  %v628 = vpop.f32.mrb[0].mxu0
  %v629 = vadd.f32 %v511, %v628
  %v630 = vpop.f32.mrb[0].mxu0
  %631 = vmatprep.mubr.bf16.mxu0 %v589
  %632 = vmatmul.mubr.bf16.gmra.mrb[0].mxu0 %v480
  %v633 = vpop.f32.mrb[0].mxu0
  %v634 = vadd.f32 %v511, %v633
  %v635 = vpop.f32.mrb[0].mxu0
  %v636 = vpop.f32.mrb[0].mxu0
  %v637 = vadd.f32 %v511, %v636
  %v638 = vpop.f32.mrb[0].mxu0
  %639 = vdwg.mxu0
  %v640 = vadd.f32 %v626, %v33
  %v641 = vadd.f32 %v629, %v34
  %v642 = vadd.f32 %v634, %v35
  %v643 = vadd.f32 %v637, %v36
  %v644 = vmax.f32 %v640, 0.0
  %v645 = vmax.f32 %v641, 0.0
  %v646 = vmax.f32 %v642, 0.0
  %v647 = vmax.f32 %v643, 0.0
  %648 = vst.msk [vmem:[%s5] sm:$0xff] %vm178, %v644
  %649 = vst.msk [vmem:[%s5 + $0x8] sm:$0xff] %vm178, %v645
  %650 = vst.msk [vmem:[%s5 + $0x10] sm:$0xff] %vm178, %v646
  %651 = vst.msk [vmem:[%s5 + $0x18] sm:$0xff] %vm178, %v647
  // Predicated region
  $region26: #{forward.1} parent=0 // pred_check
    _
  $region27: #{forward.1} parent=0 // pred_check_branch
    %653 = sbr.rel (0) target = $region29
  $region28: #{forward.1} parent=0 // pred_region
    _
  $region29: #{forward.1} parent=0 // pred_fallthru
    _
  // Predicated region
  $region30: #{forward.1} parent=0 // pred_check
    _
  $region31: #{forward.1} parent=0 // pred_check_branch
    %655 = sbr.rel (0) target = $region33
  $region32: #{forward.1} parent=0 // pred_region
    _
  $region33: #{forward.1} parent=0 // pred_fallthru
    _

</llo_original>
